<compile_context>
chip_gen: v6e
topology: v6e:2x2x1
jax: 0.10.0
libtpu: 0.0.40
codegen_flags: <defaults>
</compile_context>

<pallas_src>
import jax
import jax.numpy as jnp
import numpy as np
from jax.experimental import pallas as pl
from jax.experimental.pallas import tpu as pltpu

# ----------------------------- model config ---------------------------------
INPUT_DIM = 2          # VAE(input_dim=2) default
HIDDEN = 64            # config.encoder_layers = config.decoder_layers = [64, 64, 64]
LATENT_DIM = 8         # config.latent_dim
BATCH = 16
PAD = 128              # padded feature width (lane dim)
HALF = PAD // 2        # logvar head / eps live in lanes HALF:HALF+LATENT_DIM
RECON_OFF = 16         # recon lives in lanes RECON_OFF:RECON_OFF+INPUT_DIM of the output slab
NW = 8                 # stacked layer count (mu/logvar heads fused into one slot)
BLOCK_B_MAX = 512      # rows per grid step (VMEM-safe on v5e/v6e/v7x)
# activation = ReLU, norm != 'RMSNorm', model_name != 'bitnet_synthetic_probabilistic'


# ------------------------------ Pallas kernel --------------------------------
def _vae_kernel(xe_ref, w_ref, b_ref, out_ref):
    # xe_ref: (Bb, PAD) -> x in lanes [0:INPUT_DIM), eps in lanes [HALF:HALF+L)
    xe = xe_ref[...]

    def linear(h, i):
        # w_ref[i]: (PAD, PAD), b_ref[i]: (1, PAD); static index -> static slice
        return jnp.dot(h, w_ref[i], preferred_element_type=jnp.float32) + b_ref[i]

    # ---- encoder: Linear -> ReLU (x3) ----
    # eps in lanes HALF:HALF+L of xe hits the all-zero rows of W[0], so xe can
    # be fed directly (no separate x slab).
    h = xe
    for i in range(3):
        h = jnp.maximum(linear(h, i), 0.0)

    # ---- fused latent heads: mu in lanes 0:L, logvar in lanes HALF:HALF+L ----
    head = linear(h, 3)

    # ---- reparameterize: z = mu + eps * exp(0.5 * logvar) ----
    # roll by HALF lanes (XLU op, off the VPU critical path; HALF == PAD/2 so
    # the roll direction is irrelevant): eps -> lanes 0:L, logvar -> lanes 0:L.
    eps_lo = pltpu.roll(xe, shift=HALF, axis=1)      # eps in 0:L, x junk in HALF:HALF+INPUT_DIM
    lv_lo = pltpu.roll(head, shift=HALF, axis=1)     # logvar in 0:L, mu junk in HALF:HALF+L
    lane = jax.lax.broadcasted_iota(jnp.int32, lv_lo.shape, 1)
    lv_lo = jnp.where(lane < LATENT_DIM, lv_lo, 0.0)  # mask -> no 0*inf NaN hazard
    z = head + eps_lo * jnp.exp(0.5 * lv_lo)
    # z lanes 0:L are correct; junk in lanes HALF:HALF+L is annihilated by the
    # all-zero rows >= L of the first decoder weight W[4].

    # ---- decoder: Linear -> ReLU (x3), then final Linear back to input_dim ----
    d = z
    for i in range(4, 7):
        d = jnp.maximum(linear(d, i), 0.0)
    recon = linear(d, 7)   # nonzero only in lanes RECON_OFF:RECON_OFF+INPUT_DIM

    # ---- merged output: head (lanes 0:L and HALF:HALF+L) + recon (disjoint) ----
    out_ref[...] = head + recon


# ------------------------ one-time parameter packing -------------------------
def pack_params(params):
    """Pack the 9 (w, b) pairs into stacked, 128-padded f32 slabs.

    Layout (slot -> layer):
      0..2 : encoder Linear 1..3
      3    : fused mean/log_var head (mu -> cols 0:L, logvar -> cols HALF:HALF+L)
      4..6 : decoder Linear 1..3
      7    : decoder output Linear (-> cols RECON_OFF:RECON_OFF+INPUT_DIM)
    Done once at setup time; NOT part of the per-call path.
    """
    W = np.zeros((NW, PAD, PAD), np.float32)
    B = np.zeros((NW, 1, PAD), np.float32)

    def put(slot, w, b, col0=0):
        w = np.asarray(w, np.float32)
        b = np.asarray(b, np.float32)
        W[slot, : w.shape[0], col0: col0 + w.shape[1]] = w
        B[slot, 0, col0: col0 + b.shape[0]] = b

    for i in range(3):                       # encoder
        put(i, *params[i])
    put(3, *params[3], col0=0)               # mean head
    put(3, *params[4], col0=HALF)            # log_var head (fused, upper lanes)
    for j in range(3):                       # decoder hidden layers
        put(4 + j, *params[5 + j])
    put(7, *params[8], col0=RECON_OFF)       # decoder output layer (shifted lanes)

    # --- invariants the fused layout relies on (guard against layout drift) ---
    assert LATENT_DIM <= RECON_OFF and RECON_OFF + INPUT_DIM <= HALF
    assert not W[0, INPUT_DIM:, :].any(), "encoder L1 rows beyond input_dim must be 0 (eps lanes)"
    assert not W[4, LATENT_DIM:, :].any(), "decoder L1 rows beyond latent_dim must be 0 (junk z lanes)"
    assert not W[3, :, RECON_OFF:RECON_OFF + INPUT_DIM].any()
    assert not B[3, :, RECON_OFF:RECON_OFF + INPUT_DIM].any()

    return jnp.asarray(W), jnp.asarray(B)


# ------------------------------ wrapper --------------------------------------
def _round_up(n, m):
    return ((n + m - 1) // m) * m


@jax.jit
def vae_forward(x, eps, w_stack, b_stack):
    """x: [B, INPUT_DIM] f32, eps: [B, LATENT_DIM] f32 (explicit randn noise).
    Returns (recon [B, INPUT_DIM], mu [B, LATENT_DIM], logvar [B, LATENT_DIM])."""
    b = x.shape[0]
    bp = max(8, _round_up(b, 8))

    # Block choice: >= 2 parallel blocks once there is enough work (v7x has 2
    # TensorCores), blocks >= 128 rows so per-step overhead stays amortized,
    # capped at BLOCK_B_MAX rows to stay comfortably inside scoped VMEM.
    if bp > BLOCK_B_MAX:
        n_blocks = max(2, -(-bp // BLOCK_B_MAX))
        block_b = _round_up(-(-bp // n_blocks), 8)
    elif bp >= 256:
        block_b = _round_up(-(-bp // 2), 8)
    else:
        block_b = bp
    bp = _round_up(bp, block_b)
    grid = (bp // block_b,)

    # Single fusible padded input slab: x -> lanes 0:INPUT_DIM, eps -> lanes
    # HALF:HALF+LATENT_DIM (no zeros + dynamic-update-slice materialization).
    x_half = jnp.pad(x.astype(jnp.float32), ((0, bp - b), (0, HALF - INPUT_DIM)))
    e_half = jnp.pad(eps.astype(jnp.float32), ((0, bp - b), (0, HALF - LATENT_DIM)))
    xe = jnp.concatenate([x_half, e_half], axis=1)          # (bp, PAD)

    cost = pl.CostEstimate(
        flops=2 * bp * PAD * PAD * NW,
        transcendentals=bp * PAD,
        bytes_accessed=4 * (w_stack.size + b_stack.size + xe.size + bp * PAD),
    )

    out = pl.pallas_call(
        _vae_kernel,
        out_shape=jax.ShapeDtypeStruct((bp, PAD), jnp.float32),
        grid=grid,
        in_specs=[
            pl.BlockSpec((block_b, PAD), lambda i: (i, 0)),
            pl.BlockSpec((NW, PAD, PAD), lambda i: (0, 0, 0)),   # resident weights
            pl.BlockSpec((NW, 1, PAD), lambda i: (0, 0, 0)),     # resident biases
        ],
        out_specs=pl.BlockSpec((block_b, PAD), lambda i: (i, 0)),
        compiler_params=pltpu.CompilerParams(dimension_semantics=("parallel",)),
        cost_estimate=cost,
    )(xe, w_stack, b_stack)

    recon = out[:b, RECON_OFF:RECON_OFF + INPUT_DIM]
    mu = out[:b, :LATENT_DIM]
    logvar = out[:b, HALF:HALF + LATENT_DIM]
    return recon, mu, logvar


# ----------------------- deterministic parameter init ------------------------
def init_params(key):
    """Mimics torch.nn.Linear default init: U(-1/sqrt(fan_in), 1/sqrt(fan_in))."""
    dims = [
        (INPUT_DIM, HIDDEN),   # encoder L1
        (HIDDEN, HIDDEN),      # encoder L2
        (HIDDEN, HIDDEN),      # encoder L3
        (HIDDEN, LATENT_DIM),  # mean_layer
        (HIDDEN, LATENT_DIM),  # log_var_layer
        (LATENT_DIM, HIDDEN),  # decoder L1
        (HIDDEN, HIDDEN),      # decoder L2
        (HIDDEN, HIDDEN),      # decoder L3
        (HIDDEN, INPUT_DIM),   # decoder output
    ]
    params = []
    for (fan_in, fan_out) in dims:
        key, kw, kb = jax.random.split(key, 3)
        bound = 1.0 / np.sqrt(fan_in)
        w = jax.random.uniform(kw, (fan_in, fan_out), jnp.float32, -bound, bound)
        bias = jax.random.uniform(kb, (fan_out,), jnp.float32, -bound, bound)
        params.append((w, bias))
    return params


# ------------------------------ plain-JAX reference --------------------------
def vae_reference(x, eps, params):
    def lin(h, p):
        return h @ p[0] + p[1]

    h = x
    for i in range(3):
        h = jax.nn.relu(lin(h, params[i]))
    mu = lin(h, params[3])
    logvar = lin(h, params[4])
    z = mu + eps * jnp.exp(0.5 * logvar)
    d = z
    for i in range(5, 8):
        d = jax.nn.relu(lin(d, params[i]))
    recon = lin(d, params[8])
    return recon, mu, logvar


# ---------------------------------- main --------------------------------------
if __name__ == "__main__":
    key = jax.random.PRNGKey(0)
    k_params, k_x, k_eps = jax.random.split(key, 3)

    params = init_params(k_params)
    w_stack, b_stack = pack_params(params)   # one-time packing (not per-call)

    x = jax.random.normal(k_x, (BATCH, INPUT_DIM), jnp.float32)
    # torch.randn_like(std) in reparameterize -> provide eps explicitly
    eps = jax.random.normal(k_eps, (BATCH, LATENT_DIM), jnp.float32)

    recon, mu, logvar = vae_forward(x, eps, w_stack, b_stack)
    jax.block_until_ready((recon, mu, logvar))

    recon_r, mu_r, lv_r = vae_reference(x, eps, params)
    np.testing.assert_allclose(np.asarray(recon), np.asarray(recon_r), rtol=1e-5, atol=1e-5)
    np.testing.assert_allclose(np.asarray(mu), np.asarray(mu_r), rtol=1e-5, atol=1e-5)
    np.testing.assert_allclose(np.asarray(logvar), np.asarray(lv_r), rtol=1e-5, atol=1e-5)

    print("KERNEL_OK")
</pallas_src>

<mosaic_0001>
module attributes {stable_mosaic.version = 11 : i64} {
  func.func @_vae_kernel(%arg0: i32, %arg1: memref<16x128xf32, #tpu.memory_space<vmem>>, %arg2: memref<8x128x128xf32, #tpu.memory_space<vmem>>, %arg3: memref<8x1x128xf32, #tpu.memory_space<vmem>>, %arg4: memref<16x128xf32, #tpu.memory_space<vmem>>) attributes {dimension_semantics = [#tpu.dimension_semantics<parallel>], iteration_bounds = array<i64: 1>, scalar_prefetch = 0 : i64, scratch_operands = 0 : i64, tpu.core_type = #tpu.core_type<tc>, window_params = [{transform_indices = @transform_0, window_bounds = array<i64: 16, 128>}, {pipeline_mode = #tpu.pipeline_mode<synchronous>, transform_indices = @transform_1, window_bounds = array<i64: 8, 128, 128>}, {pipeline_mode = #tpu.pipeline_mode<synchronous>, transform_indices = @transform_2, window_bounds = array<i64: 8, 1, 128>}, {transform_indices = @transform_3, window_bounds = array<i64: 16, 128>}]} {
    %c0 = arith.constant 0 : index
    %c0_0 = arith.constant 0 : index
    %0 = vector.load %arg1[%c0, %c0_0] : memref<16x128xf32, #tpu.memory_space<vmem>>, vector<16x128xf32>
    %c0_1 = arith.constant 0 : index
    %c0_2 = arith.constant 0 : index
    %c0_3 = arith.constant 0 : index
    %1 = vector.load %arg2[%c0_1, %c0_2, %c0_3] : memref<8x128x128xf32, #tpu.memory_space<vmem>>, vector<1x128x128xf32>
    %2 = vector.shape_cast %1 : vector<1x128x128xf32> to vector<128x128xf32>
    %cst = arith.constant dense<0.000000e+00> : vector<16x128xf32>
    %3 = tpu.matmul %0, %2, %cst {dimension_numbers = #tpu.dot_dimension_numbers<[1], [0], [0], [1], [0, 0, 1, 1], [], []>} : vector<16x128xf32>, vector<128x128xf32>, vector<16x128xf32> -> vector<16x128xf32>
    %c0_4 = arith.constant 0 : index
    %c0_5 = arith.constant 0 : index
    %c0_6 = arith.constant 0 : index
    %4 = vector.load %arg3[%c0_4, %c0_5, %c0_6] : memref<8x1x128xf32, #tpu.memory_space<vmem>>, vector<1x1x128xf32>
    %5 = vector.shape_cast %4 : vector<1x1x128xf32> to vector<1x128xf32>
    %6 = vector.broadcast %5 : vector<1x128xf32> to vector<16x128xf32>
    %7 = arith.addf %3, %6 : vector<16x128xf32>
    %cst_7 = arith.constant 0.000000e+00 : f32
    %8 = vector.broadcast %cst_7 : f32 to vector<16x128xf32>
    %9 = arith.maximumf %7, %8 : vector<16x128xf32>
    %c1 = arith.constant 1 : index
    %c0_8 = arith.constant 0 : index
    %c0_9 = arith.constant 0 : index
    %10 = vector.load %arg2[%c1, %c0_8, %c0_9] : memref<8x128x128xf32, #tpu.memory_space<vmem>>, vector<1x128x128xf32>
    %11 = vector.shape_cast %10 : vector<1x128x128xf32> to vector<128x128xf32>
    %cst_10 = arith.constant dense<0.000000e+00> : vector<16x128xf32>
    %12 = tpu.matmul %9, %11, %cst_10 {dimension_numbers = #tpu.dot_dimension_numbers<[1], [0], [0], [1], [0, 0, 1, 1], [], []>} : vector<16x128xf32>, vector<128x128xf32>, vector<16x128xf32> -> vector<16x128xf32>
    %c1_11 = arith.constant 1 : index
    %c0_12 = arith.constant 0 : index
    %c0_13 = arith.constant 0 : index
    %13 = vector.load %arg3[%c1_11, %c0_12, %c0_13] : memref<8x1x128xf32, #tpu.memory_space<vmem>>, vector<1x1x128xf32>
    %14 = vector.shape_cast %13 : vector<1x1x128xf32> to vector<1x128xf32>
    %15 = vector.broadcast %14 : vector<1x128xf32> to vector<16x128xf32>
    %16 = arith.addf %12, %15 : vector<16x128xf32>
    %cst_14 = arith.constant 0.000000e+00 : f32
    %17 = vector.broadcast %cst_14 : f32 to vector<16x128xf32>
    %18 = arith.maximumf %16, %17 : vector<16x128xf32>
    %c2 = arith.constant 2 : index
    %c0_15 = arith.constant 0 : index
    %c0_16 = arith.constant 0 : index
    %19 = vector.load %arg2[%c2, %c0_15, %c0_16] : memref<8x128x128xf32, #tpu.memory_space<vmem>>, vector<1x128x128xf32>
    %20 = vector.shape_cast %19 : vector<1x128x128xf32> to vector<128x128xf32>
    %cst_17 = arith.constant dense<0.000000e+00> : vector<16x128xf32>
    %21 = tpu.matmul %18, %20, %cst_17 {dimension_numbers = #tpu.dot_dimension_numbers<[1], [0], [0], [1], [0, 0, 1, 1], [], []>} : vector<16x128xf32>, vector<128x128xf32>, vector<16x128xf32> -> vector<16x128xf32>
    %c2_18 = arith.constant 2 : index
    %c0_19 = arith.constant 0 : index
    %c0_20 = arith.constant 0 : index
    %22 = vector.load %arg3[%c2_18, %c0_19, %c0_20] : memref<8x1x128xf32, #tpu.memory_space<vmem>>, vector<1x1x128xf32>
    %23 = vector.shape_cast %22 : vector<1x1x128xf32> to vector<1x128xf32>
    %24 = vector.broadcast %23 : vector<1x128xf32> to vector<16x128xf32>
    %25 = arith.addf %21, %24 : vector<16x128xf32>
    %cst_21 = arith.constant 0.000000e+00 : f32
    %26 = vector.broadcast %cst_21 : f32 to vector<16x128xf32>
    %27 = arith.maximumf %25, %26 : vector<16x128xf32>
    %c3 = arith.constant 3 : index
    %c0_22 = arith.constant 0 : index
    %c0_23 = arith.constant 0 : index
    %28 = vector.load %arg2[%c3, %c0_22, %c0_23] : memref<8x128x128xf32, #tpu.memory_space<vmem>>, vector<1x128x128xf32>
    %29 = vector.shape_cast %28 : vector<1x128x128xf32> to vector<128x128xf32>
    %cst_24 = arith.constant dense<0.000000e+00> : vector<16x128xf32>
    %30 = tpu.matmul %27, %29, %cst_24 {dimension_numbers = #tpu.dot_dimension_numbers<[1], [0], [0], [1], [0, 0, 1, 1], [], []>} : vector<16x128xf32>, vector<128x128xf32>, vector<16x128xf32> -> vector<16x128xf32>
    %c3_25 = arith.constant 3 : index
    %c0_26 = arith.constant 0 : index
    %c0_27 = arith.constant 0 : index
    %31 = vector.load %arg3[%c3_25, %c0_26, %c0_27] : memref<8x1x128xf32, #tpu.memory_space<vmem>>, vector<1x1x128xf32>
    %32 = vector.shape_cast %31 : vector<1x1x128xf32> to vector<1x128xf32>
    %33 = vector.broadcast %32 : vector<1x128xf32> to vector<16x128xf32>
    %34 = arith.addf %30, %33 : vector<16x128xf32>
    %c64_i32 = arith.constant 64 : i32
    %35 = tpu.dynamic_rotate %0 by %c64_i32 dim 1 : vector<16x128xf32>, i32 -> vector<16x128xf32>
    %c64_i32_28 = arith.constant 64 : i32
    %36 = tpu.dynamic_rotate %34 by %c64_i32_28 dim 1 : vector<16x128xf32>, i32 -> vector<16x128xf32>
    %37 = tpu.iota {dimensions = array<i32: 1>} : vector<16x128xi32>
    %c8_i32 = arith.constant 8 : i32
    %38 = vector.broadcast %c8_i32 : i32 to vector<16x128xi32>
    %39 = arith.cmpi slt, %37, %38 : vector<16x128xi32>
    %cst_29 = arith.constant 0.000000e+00 : f32
    %40 = vector.broadcast %cst_29 : f32 to vector<16x128xf32>
    %41 = arith.select %39, %36, %40 : vector<16x128xi1>, vector<16x128xf32>
    %cst_30 = arith.constant 5.000000e-01 : f32
    %42 = vector.broadcast %cst_30 : f32 to vector<16x128xf32>
    %43 = arith.mulf %42, %41 : vector<16x128xf32>
    %44 = math.exp %43 : vector<16x128xf32>
    %45 = arith.mulf %35, %44 : vector<16x128xf32>
    %46 = arith.addf %34, %45 : vector<16x128xf32>
    %c4 = arith.constant 4 : index
    %c0_31 = arith.constant 0 : index
    %c0_32 = arith.constant 0 : index
    %47 = vector.load %arg2[%c4, %c0_31, %c0_32] : memref<8x128x128xf32, #tpu.memory_space<vmem>>, vector<1x128x128xf32>
    %48 = vector.shape_cast %47 : vector<1x128x128xf32> to vector<128x128xf32>
    %cst_33 = arith.constant dense<0.000000e+00> : vector<16x128xf32>
    %49 = tpu.matmul %46, %48, %cst_33 {dimension_numbers = #tpu.dot_dimension_numbers<[1], [0], [0], [1], [0, 0, 1, 1], [], []>} : vector<16x128xf32>, vector<128x128xf32>, vector<16x128xf32> -> vector<16x128xf32>
    %c4_34 = arith.constant 4 : index
    %c0_35 = arith.constant 0 : index
    %c0_36 = arith.constant 0 : index
    %50 = vector.load %arg3[%c4_34, %c0_35, %c0_36] : memref<8x1x128xf32, #tpu.memory_space<vmem>>, vector<1x1x128xf32>
    %51 = vector.shape_cast %50 : vector<1x1x128xf32> to vector<1x128xf32>
    %52 = vector.broadcast %51 : vector<1x128xf32> to vector<16x128xf32>
    %53 = arith.addf %49, %52 : vector<16x128xf32>
    %cst_37 = arith.constant 0.000000e+00 : f32
    %54 = vector.broadcast %cst_37 : f32 to vector<16x128xf32>
    %55 = arith.maximumf %53, %54 : vector<16x128xf32>
    %c5 = arith.constant 5 : index
    %c0_38 = arith.constant 0 : index
    %c0_39 = arith.constant 0 : index
    %56 = vector.load %arg2[%c5, %c0_38, %c0_39] : memref<8x128x128xf32, #tpu.memory_space<vmem>>, vector<1x128x128xf32>
    %57 = vector.shape_cast %56 : vector<1x128x128xf32> to vector<128x128xf32>
    %cst_40 = arith.constant dense<0.000000e+00> : vector<16x128xf32>
    %58 = tpu.matmul %55, %57, %cst_40 {dimension_numbers = #tpu.dot_dimension_numbers<[1], [0], [0], [1], [0, 0, 1, 1], [], []>} : vector<16x128xf32>, vector<128x128xf32>, vector<16x128xf32> -> vector<16x128xf32>
    %c5_41 = arith.constant 5 : index
    %c0_42 = arith.constant 0 : index
    %c0_43 = arith.constant 0 : index
    %59 = vector.load %arg3[%c5_41, %c0_42, %c0_43] : memref<8x1x128xf32, #tpu.memory_space<vmem>>, vector<1x1x128xf32>
    %60 = vector.shape_cast %59 : vector<1x1x128xf32> to vector<1x128xf32>
    %61 = vector.broadcast %60 : vector<1x128xf32> to vector<16x128xf32>
    %62 = arith.addf %58, %61 : vector<16x128xf32>
    %cst_44 = arith.constant 0.000000e+00 : f32
    %63 = vector.broadcast %cst_44 : f32 to vector<16x128xf32>
    %64 = arith.maximumf %62, %63 : vector<16x128xf32>
    %c6 = arith.constant 6 : index
    %c0_45 = arith.constant 0 : index
    %c0_46 = arith.constant 0 : index
    %65 = vector.load %arg2[%c6, %c0_45, %c0_46] : memref<8x128x128xf32, #tpu.memory_space<vmem>>, vector<1x128x128xf32>
    %66 = vector.shape_cast %65 : vector<1x128x128xf32> to vector<128x128xf32>
    %cst_47 = arith.constant dense<0.000000e+00> : vector<16x128xf32>
    %67 = tpu.matmul %64, %66, %cst_47 {dimension_numbers = #tpu.dot_dimension_numbers<[1], [0], [0], [1], [0, 0, 1, 1], [], []>} : vector<16x128xf32>, vector<128x128xf32>, vector<16x128xf32> -> vector<16x128xf32>
    %c6_48 = arith.constant 6 : index
    %c0_49 = arith.constant 0 : index
    %c0_50 = arith.constant 0 : index
    %68 = vector.load %arg3[%c6_48, %c0_49, %c0_50] : memref<8x1x128xf32, #tpu.memory_space<vmem>>, vector<1x1x128xf32>
    %69 = vector.shape_cast %68 : vector<1x1x128xf32> to vector<1x128xf32>
    %70 = vector.broadcast %69 : vector<1x128xf32> to vector<16x128xf32>
    %71 = arith.addf %67, %70 : vector<16x128xf32>
    %cst_51 = arith.constant 0.000000e+00 : f32
    %72 = vector.broadcast %cst_51 : f32 to vector<16x128xf32>
    %73 = arith.maximumf %71, %72 : vector<16x128xf32>
    %c7 = arith.constant 7 : index
    %c0_52 = arith.constant 0 : index
    %c0_53 = arith.constant 0 : index
    %74 = vector.load %arg2[%c7, %c0_52, %c0_53] : memref<8x128x128xf32, #tpu.memory_space<vmem>>, vector<1x128x128xf32>
    %75 = vector.shape_cast %74 : vector<1x128x128xf32> to vector<128x128xf32>
    %cst_54 = arith.constant dense<0.000000e+00> : vector<16x128xf32>
    %76 = tpu.matmul %73, %75, %cst_54 {dimension_numbers = #tpu.dot_dimension_numbers<[1], [0], [0], [1], [0, 0, 1, 1], [], []>} : vector<16x128xf32>, vector<128x128xf32>, vector<16x128xf32> -> vector<16x128xf32>
    %c7_55 = arith.constant 7 : index
    %c0_56 = arith.constant 0 : index
    %c0_57 = arith.constant 0 : index
    %77 = vector.load %arg3[%c7_55, %c0_56, %c0_57] : memref<8x1x128xf32, #tpu.memory_space<vmem>>, vector<1x1x128xf32>
    %78 = vector.shape_cast %77 : vector<1x1x128xf32> to vector<1x128xf32>
    %79 = vector.broadcast %78 : vector<1x128xf32> to vector<16x128xf32>
    %80 = arith.addf %76, %79 : vector<16x128xf32>
    %81 = arith.addf %34, %80 : vector<16x128xf32>
    %c0_58 = arith.constant 0 : index
    %c0_59 = arith.constant 0 : index
    %82 = vector.load %arg4[%c0_58, %c0_59] : memref<16x128xf32, #tpu.memory_space<vmem>>, vector<16x128xf32>
    tpu.vector_store %arg4[%c0_58, %c0_59], %81 {strides = array<i32>} : memref<16x128xf32, #tpu.memory_space<vmem>>, vector<16x128xf32>,
    return
  }
  func.func @transform_0(%arg0: i32) -> (i32, i32) {
    %c0_i32 = arith.constant 0 : i32
    %c0_i32_0 = arith.constant 0 : i32
    return %arg0, %c0_i32 : i32, i32
  }
  func.func @transform_1(%arg0: i32) -> (i32, i32, i32) {
    %c0_i32 = arith.constant 0 : i32
    %c0_i32_0 = arith.constant 0 : i32
    %c0_i32_1 = arith.constant 0 : i32
    %c0_i32_2 = arith.constant 0 : i32
    return %c0_i32, %c0_i32_0, %c0_i32_1 : i32, i32, i32
  }
  func.func @transform_2(%arg0: i32) -> (i32, i32, i32) {
    %c0_i32 = arith.constant 0 : i32
    %c0_i32_0 = arith.constant 0 : i32
    %c0_i32_1 = arith.constant 0 : i32
    %c0_i32_2 = arith.constant 0 : i32
    return %c0_i32, %c0_i32_0, %c0_i32_1 : i32, i32, i32
  }
  func.func @transform_3(%arg0: i32) -> (i32, i32) {
    %c0_i32 = arith.constant 0 : i32
    %c0_i32_0 = arith.constant 0 : i32
    return %arg0, %c0_i32 : i32, i32
  }
}

</mosaic_0001>

<llo_original>
// kernel: vae_forward.1
$region0: #{vae_forward.1}
  #allocation0 [shape = 'u32[]', space=smem, size = 0x4, offset = 0x4, fixed_abs, tag = 'smem constant byte address 0x4 - core index']
  #allocation1 [shape = 'u32[144,128]{1,0:T(1,128)}', space=vmem, size = 0x12000, scoped, tag = 'internal scratch']
  %s0 = inlined_call_operand.vmem [shape: f32[16,128], index: 0, kind: input, shape index: {}]
  %s1 = inlined_call_operand.hbm [shape: f32[8,128,128], index: 1, kind: input, shape index: {}]
  %s2 = inlined_call_operand.vmem [shape: f32[8,1,128], index: 2, kind: input, shape index: {}]
  %s3 = inlined_call_operand.vmem [shape: f32[16,128], index: 3, kind: output, shape index: {}]
  %s4 = sld [smem:[#allocation0]]
  $region26: #{vae_forward.1} parent=0
    _
  %s6 = ssub.s32 1, %s4
  %s7 = scalar_select 0, %s6, %s4
  $region1: #{vae_forward.1} parent=0
    #allocation2 [shape = 'u8[524288]{0}', space=vmem, size = 0x80000, scoped, tag = 'input window, operand 1, single buffered']
    #allocation3 [shape = 's32[1]{0}', space=sflag, size = 0x4, scoped, tag = 'scoped memory for vae_forward.1']
    %8 = vsyncpa [#allocation3], 0
    // Predicated region
    $region2: #{vae_forward.1} parent=1 // pred_check
      _
    $region3: #{vae_forward.1} parent=1 // pred_check_branch
      %10 = sbr.rel (0) target = $region5
    $region4: #{vae_forward.1} parent=1 // pred_region
      _
    $region5: #{vae_forward.1} parent=1 // pred_fallthru
      _
    // Predicated region
    $region6: #{vae_forward.1} parent=1 // pred_check
      _
    $region7: #{vae_forward.1} parent=1 // pred_check_branch
      %12 = sbr.rel (0) target = $region9
    $region8: #{vae_forward.1} parent=1 // pred_region
      %s14 = ssub.s32 16384, 16384
      %15 = vsyncadd [#allocation3], %s14
      %s16 = sshll.u32 [#allocation2], 4
      %s17 = int_to_ptr.vmem [resolvable:$true] %s16
      %22 = dma.hbm_to_vmem [thread:$0]  %s1, 16384, %s17, [#allocation3], 128, 128, 8
    $region9: #{vae_forward.1} parent=1 // pred_fallthru
      _
    // Predicated region
    $region10: #{vae_forward.1} parent=1 // pred_check
      _
    $region11: #{vae_forward.1} parent=1 // pred_check_branch
      %24 = sbr.rel (0) target = $region13
    $region12: #{vae_forward.1} parent=1 // pred_region
      _
    $region13: #{vae_forward.1} parent=1 // pred_fallthru
      _
    // Predicated region
    $region14: #{vae_forward.1} parent=1 // pred_check
      _
    $region15: #{vae_forward.1} parent=1 // pred_check_branch
      %26 = sbr.rel (0) target = $region17
    $region16: #{vae_forward.1} parent=1 // pred_region
      %27 = dma.done [#allocation3], 16384
    $region17: #{vae_forward.1} parent=1 // pred_fallthru
      _
    %v28 = vld [vmem:[%s0] sm:$0xff]
    %v29 = vld [vmem:[%s0 + $0x8] sm:$0xff]
    %v30 = vld [vmem:[#allocation2] sm:$0xff]
    %v31 = vld [vmem:[#allocation2 + $0x8] sm:$0xff]
    %v32 = vld [vmem:[#allocation2 + $0x10] sm:$0xff]
    %v33 = vld [vmem:[#allocation2 + $0x18] sm:$0xff]
    %v34 = vld [vmem:[#allocation2 + $0x20] sm:$0xff]
    %v35 = vld [vmem:[#allocation2 + $0x28] sm:$0xff]
    %v36 = vld [vmem:[#allocation2 + $0x30] sm:$0xff]
    %v37 = vld [vmem:[#allocation2 + $0x38] sm:$0xff]
    %v38 = vld [vmem:[#allocation2 + $0x40] sm:$0xff]
    %v39 = vld [vmem:[#allocation2 + $0x48] sm:$0xff]
    %v40 = vld [vmem:[#allocation2 + $0x50] sm:$0xff]
    %v41 = vld [vmem:[#allocation2 + $0x58] sm:$0xff]
    %v42 = vld [vmem:[#allocation2 + $0x60] sm:$0xff]
    %v43 = vld [vmem:[#allocation2 + $0x68] sm:$0xff]
    %v44 = vld [vmem:[#allocation2 + $0x70] sm:$0xff]
    %v45 = vld [vmem:[#allocation2 + $0x78] sm:$0xff]
    %v46 = vld [vmem:[%s2] sm:$0x1]
    %v48 = vlaneseq
    %v49 = vshrl.u32 %v48, 7
    %v50 = vsub.s32 0, %v49
    %v51 = vrot.slane %v46, %v50
    %53 = vmatprep.subr.mxu0 0.0
    %54 = vmatpush1.msra.mxu0 %v45
    %55 = vmatprep.subr.mxu0 0.0
    %56 = vmatpush1.msra.mxu0 %v44
    %57 = vmatprep.subr.mxu0 0.0
    %58 = vmatpush1.msra.mxu0 %v43
    %59 = vmatprep.subr.mxu0 0.0
    %60 = vmatpush1.msra.mxu0 %v42
    %61 = vmatprep.subr.mxu0 0.0
    %62 = vmatpush1.msra.mxu0 %v41
    %63 = vmatprep.subr.mxu0 0.0
    %64 = vmatpush1.msra.mxu0 %v40
    %65 = vmatprep.subr.mxu0 0.0
    %66 = vmatpush1.msra.mxu0 %v39
    %67 = vmatprep.subr.mxu0 0.0
    %68 = vmatpush1.msra.mxu0 %v38
    %69 = vmatprep.subr.mxu0 0.0
    %70 = vmatpush1.msra.mxu0 %v37
    %71 = vmatprep.subr.mxu0 0.0
    %72 = vmatpush1.msra.mxu0 %v36
    %73 = vmatprep.subr.mxu0 0.0
    %74 = vmatpush1.msra.mxu0 %v35
    %75 = vmatprep.subr.mxu0 0.0
    %76 = vmatpush1.msra.mxu0 %v34
    %77 = vmatprep.subr.mxu0 0.0
    %78 = vmatpush1.msra.mxu0 %v33
    %79 = vmatprep.subr.mxu0 0.0
    %80 = vmatpush1.msra.mxu0 %v32
    %81 = vmatprep.subr.mxu0 0.0
    %82 = vmatpush1.msra.mxu0 %v31
    %83 = vmatprep.subr.mxu0 0.0
    %84 = vmatpush1.msra.mxu0 %v30
    %85 = vmatprep.subr.mxu0 0.0
    %86 = vmatpush2.msra.mxu0 0.0
    %87 = vmatprep.subr.mxu0 0.0
    %88 = vmatpush2.msra.mxu0 0.0
    %89 = vmatprep.subr.mxu0 0.0
    %90 = vmatpush2.msra.mxu0 0.0
    %91 = vmatprep.subr.mxu0 0.0
    %92 = vmatpush2.msra.mxu0 0.0
    %93 = vmatprep.subr.mxu0 0.0
    %94 = vmatpush2.msra.mxu0 0.0
    %95 = vmatprep.subr.mxu0 0.0
    %96 = vmatpush2.msra.mxu0 0.0
    %97 = vmatprep.subr.mxu0 0.0
    %98 = vmatpush2.msra.mxu0 0.0
    %99 = vmatprep.subr.mxu0 0.0
    %100 = vmatpush2.msra.mxu0 0.0
    %101 = vmatprep.subr.mxu0 0.0
    %102 = vmatpush2.msra.mxu0 0.0
    %103 = vmatprep.subr.mxu0 0.0
    %104 = vmatpush2.msra.mxu0 0.0
    %105 = vmatprep.subr.mxu0 0.0
    %106 = vmatpush2.msra.mxu0 0.0
    %107 = vmatprep.subr.mxu0 0.0
    %108 = vmatpush2.msra.mxu0 0.0
    %109 = vmatprep.subr.mxu0 0.0
    %110 = vmatpush2.msra.mxu0 0.0
    %111 = vmatprep.subr.mxu0 0.0
    %112 = vmatpush2.msra.mxu0 0.0
    %113 = vmatprep.subr.mxu0 0.0
    %114 = vmatpush2.msra.mxu0 0.0
    %115 = vmatprep.subr.mxu0 0.0
    %116 = vmatpush2.msra.mxu0 0.0
    %117 = vmatprep.mubr.f32.mxu0 0.0
    %118 = vmatmul.mubr.f32.gmra.mxu0 %v28
    %v119 = vpop.f32.mrf.mxu0
    %v120 = vadd.f32 %v51, %v119
    %v121 = vpop.f32.mrf.mxu0
    %122 = vmatprep.mubr.f32.mxu0 0.0
    %123 = vmatmul.mubr.f32.gmra.mxu0 %v29
    %v124 = vpop.f32.mrf.mxu0
    %v125 = vadd.f32 %v51, %v124
    %v126 = vpop.f32.mrf.mxu0
    %127 = vdwg.mxu0
    %v128 = vmax.f32 %v120, 0.0
    %v129 = vmax.f32 %v125, 0.0
    %s130 = scalar_lea.vmem [#allocation2], 128
    %v131 = vld [vmem:[%s130] sm:$0xff]
    %v132 = vld [vmem:[%s130 + $0x8] sm:$0xff]
    %v133 = vld [vmem:[%s130 + $0x10] sm:$0xff]
    %v134 = vld [vmem:[%s130 + $0x18] sm:$0xff]
    %v135 = vld [vmem:[%s130 + $0x20] sm:$0xff]
    %v136 = vld [vmem:[%s130 + $0x28] sm:$0xff]
    %v137 = vld [vmem:[%s130 + $0x30] sm:$0xff]
    %v138 = vld [vmem:[%s130 + $0x38] sm:$0xff]
    %v139 = vld [vmem:[%s130 + $0x40] sm:$0xff]
    %v140 = vld [vmem:[%s130 + $0x48] sm:$0xff]
    %v141 = vld [vmem:[%s130 + $0x50] sm:$0xff]
    %v142 = vld [vmem:[%s130 + $0x58] sm:$0xff]
    %v143 = vld [vmem:[%s130 + $0x60] sm:$0xff]
    %v144 = vld [vmem:[%s130 + $0x68] sm:$0xff]
    %v145 = vld [vmem:[%s130 + $0x70] sm:$0xff]
    %v146 = vld [vmem:[%s130 + $0x78] sm:$0xff]
    %s147 = scalar_lea.vmem %s2, 1
    %v148 = vld [vmem:[%s147] sm:$0x1]
    %v150 = vlaneseq
    %v151 = vshrl.u32 %v150, 7
    %v152 = vsub.s32 0, %v151
    %v153 = vrot.slane %v148, %v152
    %155 = vmatprep.subr.mxu0 0.0
    %156 = vmatpush1.msra.mxu0 %v146
    %157 = vmatprep.subr.mxu0 0.0
    %158 = vmatpush1.msra.mxu0 %v145
    %159 = vmatprep.subr.mxu0 0.0
    %160 = vmatpush1.msra.mxu0 %v144
    %161 = vmatprep.subr.mxu0 0.0
    %162 = vmatpush1.msra.mxu0 %v143
    %163 = vmatprep.subr.mxu0 0.0
    %164 = vmatpush1.msra.mxu0 %v142
    %165 = vmatprep.subr.mxu0 0.0
    %166 = vmatpush1.msra.mxu0 %v141
    %167 = vmatprep.subr.mxu0 0.0
    %168 = vmatpush1.msra.mxu0 %v140
    %169 = vmatprep.subr.mxu0 0.0
    %170 = vmatpush1.msra.mxu0 %v139
    %171 = vmatprep.subr.mxu0 0.0
    %172 = vmatpush1.msra.mxu0 %v138
    %173 = vmatprep.subr.mxu0 0.0
    %174 = vmatpush1.msra.mxu0 %v137
    %175 = vmatprep.subr.mxu0 0.0
    %176 = vmatpush1.msra.mxu0 %v136
    %177 = vmatprep.subr.mxu0 0.0
    %178 = vmatpush1.msra.mxu0 %v135
    %179 = vmatprep.subr.mxu0 0.0
    %180 = vmatpush1.msra.mxu0 %v134
    %181 = vmatprep.subr.mxu0 0.0
    %182 = vmatpush1.msra.mxu0 %v133
    %183 = vmatprep.subr.mxu0 0.0
    %184 = vmatpush1.msra.mxu0 %v132
    %185 = vmatprep.subr.mxu0 0.0
    %186 = vmatpush1.msra.mxu0 %v131
    %187 = vmatprep.subr.mxu0 0.0
    %188 = vmatpush2.msra.mxu0 0.0
    %189 = vmatprep.subr.mxu0 0.0
    %190 = vmatpush2.msra.mxu0 0.0
    %191 = vmatprep.subr.mxu0 0.0
    %192 = vmatpush2.msra.mxu0 0.0
    %193 = vmatprep.subr.mxu0 0.0
    %194 = vmatpush2.msra.mxu0 0.0
    %195 = vmatprep.subr.mxu0 0.0
    %196 = vmatpush2.msra.mxu0 0.0
    %197 = vmatprep.subr.mxu0 0.0
    %198 = vmatpush2.msra.mxu0 0.0
    %199 = vmatprep.subr.mxu0 0.0
    %200 = vmatpush2.msra.mxu0 0.0
    %201 = vmatprep.subr.mxu0 0.0
    %202 = vmatpush2.msra.mxu0 0.0
    %203 = vmatprep.subr.mxu0 0.0
    %204 = vmatpush2.msra.mxu0 0.0
    %205 = vmatprep.subr.mxu0 0.0
    %206 = vmatpush2.msra.mxu0 0.0
    %207 = vmatprep.subr.mxu0 0.0
    %208 = vmatpush2.msra.mxu0 0.0
    %209 = vmatprep.subr.mxu0 0.0
    %210 = vmatpush2.msra.mxu0 0.0
    %211 = vmatprep.subr.mxu0 0.0
    %212 = vmatpush2.msra.mxu0 0.0
    %213 = vmatprep.subr.mxu0 0.0
    %214 = vmatpush2.msra.mxu0 0.0
    %215 = vmatprep.subr.mxu0 0.0
    %216 = vmatpush2.msra.mxu0 0.0
    %217 = vmatprep.subr.mxu0 0.0
    %218 = vmatpush2.msra.mxu0 0.0
    %219 = vmatprep.mubr.f32.mxu0 0.0
    %220 = vmatmul.mubr.f32.gmra.mxu0 %v128
    %v221 = vpop.f32.mrf.mxu0
    %v222 = vadd.f32 %v153, %v221
    %v223 = vpop.f32.mrf.mxu0
    %224 = vmatprep.mubr.f32.mxu0 0.0
    %225 = vmatmul.mubr.f32.gmra.mxu0 %v129
    %v226 = vpop.f32.mrf.mxu0
    %v227 = vadd.f32 %v153, %v226
    %v228 = vpop.f32.mrf.mxu0
    %229 = vdwg.mxu0
    %v230 = vmax.f32 %v222, 0.0
    %v231 = vmax.f32 %v227, 0.0
    %s232 = scalar_lea.vmem [#allocation2], 256
    %v233 = vld [vmem:[%s232] sm:$0xff]
    %v234 = vld [vmem:[%s232 + $0x8] sm:$0xff]
    %v235 = vld [vmem:[%s232 + $0x10] sm:$0xff]
    %v236 = vld [vmem:[%s232 + $0x18] sm:$0xff]
    %v237 = vld [vmem:[%s232 + $0x20] sm:$0xff]
    %v238 = vld [vmem:[%s232 + $0x28] sm:$0xff]
    %v239 = vld [vmem:[%s232 + $0x30] sm:$0xff]
    %v240 = vld [vmem:[%s232 + $0x38] sm:$0xff]
    %v241 = vld [vmem:[%s232 + $0x40] sm:$0xff]
    %v242 = vld [vmem:[%s232 + $0x48] sm:$0xff]
    %v243 = vld [vmem:[%s232 + $0x50] sm:$0xff]
    %v244 = vld [vmem:[%s232 + $0x58] sm:$0xff]
    %v245 = vld [vmem:[%s232 + $0x60] sm:$0xff]
    %v246 = vld [vmem:[%s232 + $0x68] sm:$0xff]
    %v247 = vld [vmem:[%s232 + $0x70] sm:$0xff]
    %v248 = vld [vmem:[%s232 + $0x78] sm:$0xff]
    %s249 = scalar_lea.vmem %s2, 2
    %v250 = vld [vmem:[%s249] sm:$0x1]
    %v252 = vlaneseq
    %v253 = vshrl.u32 %v252, 7
    %v254 = vsub.s32 0, %v253
    %v255 = vrot.slane %v250, %v254
    %257 = vmatprep.subr.mxu0 0.0
    %258 = vmatpush1.msra.mxu0 %v248
    %259 = vmatprep.subr.mxu0 0.0
    %260 = vmatpush1.msra.mxu0 %v247
    %261 = vmatprep.subr.mxu0 0.0
    %262 = vmatpush1.msra.mxu0 %v246
    %263 = vmatprep.subr.mxu0 0.0
    %264 = vmatpush1.msra.mxu0 %v245
    %265 = vmatprep.subr.mxu0 0.0
    %266 = vmatpush1.msra.mxu0 %v244
    %267 = vmatprep.subr.mxu0 0.0
    %268 = vmatpush1.msra.mxu0 %v243
    %269 = vmatprep.subr.mxu0 0.0
    %270 = vmatpush1.msra.mxu0 %v242
    %271 = vmatprep.subr.mxu0 0.0
    %272 = vmatpush1.msra.mxu0 %v241
    %273 = vmatprep.subr.mxu0 0.0
    %274 = vmatpush1.msra.mxu0 %v240
    %275 = vmatprep.subr.mxu0 0.0
    %276 = vmatpush1.msra.mxu0 %v239
    %277 = vmatprep.subr.mxu0 0.0
    %278 = vmatpush1.msra.mxu0 %v238
    %279 = vmatprep.subr.mxu0 0.0
    %280 = vmatpush1.msra.mxu0 %v237
    %281 = vmatprep.subr.mxu0 0.0
    %282 = vmatpush1.msra.mxu0 %v236
    %283 = vmatprep.subr.mxu0 0.0
    %284 = vmatpush1.msra.mxu0 %v235
    %285 = vmatprep.subr.mxu0 0.0
    %286 = vmatpush1.msra.mxu0 %v234
    %287 = vmatprep.subr.mxu0 0.0
    %288 = vmatpush1.msra.mxu0 %v233
    %289 = vmatprep.subr.mxu0 0.0
    %290 = vmatpush2.msra.mxu0 0.0
    %291 = vmatprep.subr.mxu0 0.0
    %292 = vmatpush2.msra.mxu0 0.0
    %293 = vmatprep.subr.mxu0 0.0
    %294 = vmatpush2.msra.mxu0 0.0
    %295 = vmatprep.subr.mxu0 0.0
    %296 = vmatpush2.msra.mxu0 0.0
    %297 = vmatprep.subr.mxu0 0.0
    %298 = vmatpush2.msra.mxu0 0.0
    %299 = vmatprep.subr.mxu0 0.0
    %300 = vmatpush2.msra.mxu0 0.0
    %301 = vmatprep.subr.mxu0 0.0
    %302 = vmatpush2.msra.mxu0 0.0
    %303 = vmatprep.subr.mxu0 0.0
    %304 = vmatpush2.msra.mxu0 0.0
    %305 = vmatprep.subr.mxu0 0.0
    %306 = vmatpush2.msra.mxu0 0.0
    %307 = vmatprep.subr.mxu0 0.0
    %308 = vmatpush2.msra.mxu0 0.0
    %309 = vmatprep.subr.mxu0 0.0
    %310 = vmatpush2.msra.mxu0 0.0
    %311 = vmatprep.subr.mxu0 0.0
    %312 = vmatpush2.msra.mxu0 0.0
    %313 = vmatprep.subr.mxu0 0.0
    %314 = vmatpush2.msra.mxu0 0.0
    %315 = vmatprep.subr.mxu0 0.0
    %316 = vmatpush2.msra.mxu0 0.0
    %317 = vmatprep.subr.mxu0 0.0
    %318 = vmatpush2.msra.mxu0 0.0
    %319 = vmatprep.subr.mxu0 0.0
    %320 = vmatpush2.msra.mxu0 0.0
    %321 = vmatprep.mubr.f32.mxu0 0.0
    %322 = vmatmul.mubr.f32.gmra.mxu0 %v230
    %v323 = vpop.f32.mrf.mxu0
    %v324 = vadd.f32 %v255, %v323
    %v325 = vpop.f32.mrf.mxu0
    %326 = vmatprep.mubr.f32.mxu0 0.0
    %327 = vmatmul.mubr.f32.gmra.mxu0 %v231
    %v328 = vpop.f32.mrf.mxu0
    %v329 = vadd.f32 %v255, %v328
    %v330 = vpop.f32.mrf.mxu0
    %331 = vdwg.mxu0
    %v332 = vmax.f32 %v324, 0.0
    %v333 = vmax.f32 %v329, 0.0
    %s334 = scalar_lea.vmem [#allocation2], 384
    %v335 = vld [vmem:[%s334] sm:$0xff]
    %v336 = vld [vmem:[%s334 + $0x8] sm:$0xff]
    %v337 = vld [vmem:[%s334 + $0x10] sm:$0xff]
    %v338 = vld [vmem:[%s334 + $0x18] sm:$0xff]
    %v339 = vld [vmem:[%s334 + $0x20] sm:$0xff]
    %v340 = vld [vmem:[%s334 + $0x28] sm:$0xff]
    %v341 = vld [vmem:[%s334 + $0x30] sm:$0xff]
    %v342 = vld [vmem:[%s334 + $0x38] sm:$0xff]
    %v343 = vld [vmem:[%s334 + $0x40] sm:$0xff]
    %v344 = vld [vmem:[%s334 + $0x48] sm:$0xff]
    %v345 = vld [vmem:[%s334 + $0x50] sm:$0xff]
    %v346 = vld [vmem:[%s334 + $0x58] sm:$0xff]
    %v347 = vld [vmem:[%s334 + $0x60] sm:$0xff]
    %v348 = vld [vmem:[%s334 + $0x68] sm:$0xff]
    %v349 = vld [vmem:[%s334 + $0x70] sm:$0xff]
    %v350 = vld [vmem:[%s334 + $0x78] sm:$0xff]
    %s351 = scalar_lea.vmem %s2, 3
    %v352 = vld [vmem:[%s351] sm:$0x1]
    %v354 = vlaneseq
    %v355 = vshrl.u32 %v354, 7
    %v356 = vsub.s32 0, %v355
    %v357 = vrot.slane %v352, %v356
    %359 = vmatprep.subr.mxu0 0.0
    %360 = vmatpush1.msra.mxu0 %v350
    %361 = vmatprep.subr.mxu0 0.0
    %362 = vmatpush1.msra.mxu0 %v349
    %363 = vmatprep.subr.mxu0 0.0
    %364 = vmatpush1.msra.mxu0 %v348
    %365 = vmatprep.subr.mxu0 0.0
    %366 = vmatpush1.msra.mxu0 %v347
    %367 = vmatprep.subr.mxu0 0.0
    %368 = vmatpush1.msra.mxu0 %v346
    %369 = vmatprep.subr.mxu0 0.0
    %370 = vmatpush1.msra.mxu0 %v345
    %371 = vmatprep.subr.mxu0 0.0
    %372 = vmatpush1.msra.mxu0 %v344
    %373 = vmatprep.subr.mxu0 0.0
    %374 = vmatpush1.msra.mxu0 %v343
    %375 = vmatprep.subr.mxu0 0.0
    %376 = vmatpush1.msra.mxu0 %v342
    %377 = vmatprep.subr.mxu0 0.0
    %378 = vmatpush1.msra.mxu0 %v341
    %379 = vmatprep.subr.mxu0 0.0
    %380 = vmatpush1.msra.mxu0 %v340
    %381 = vmatprep.subr.mxu0 0.0
    %382 = vmatpush1.msra.mxu0 %v339
    %383 = vmatprep.subr.mxu0 0.0
    %384 = vmatpush1.msra.mxu0 %v338
    %385 = vmatprep.subr.mxu0 0.0
    %386 = vmatpush1.msra.mxu0 %v337
    %387 = vmatprep.subr.mxu0 0.0
    %388 = vmatpush1.msra.mxu0 %v336
    %389 = vmatprep.subr.mxu0 0.0
    %390 = vmatpush1.msra.mxu0 %v335
    %391 = vmatprep.subr.mxu0 0.0
    %392 = vmatpush2.msra.mxu0 0.0
    %393 = vmatprep.subr.mxu0 0.0
    %394 = vmatpush2.msra.mxu0 0.0
    %395 = vmatprep.subr.mxu0 0.0
    %396 = vmatpush2.msra.mxu0 0.0
    %397 = vmatprep.subr.mxu0 0.0
    %398 = vmatpush2.msra.mxu0 0.0
    %399 = vmatprep.subr.mxu0 0.0
    %400 = vmatpush2.msra.mxu0 0.0
    %401 = vmatprep.subr.mxu0 0.0
    %402 = vmatpush2.msra.mxu0 0.0
    %403 = vmatprep.subr.mxu0 0.0
    %404 = vmatpush2.msra.mxu0 0.0
    %405 = vmatprep.subr.mxu0 0.0
    %406 = vmatpush2.msra.mxu0 0.0
    %407 = vmatprep.subr.mxu0 0.0
    %408 = vmatpush2.msra.mxu0 0.0
    %409 = vmatprep.subr.mxu0 0.0
    %410 = vmatpush2.msra.mxu0 0.0
    %411 = vmatprep.subr.mxu0 0.0
    %412 = vmatpush2.msra.mxu0 0.0
    %413 = vmatprep.subr.mxu0 0.0
    %414 = vmatpush2.msra.mxu0 0.0
    %415 = vmatprep.subr.mxu0 0.0
    %416 = vmatpush2.msra.mxu0 0.0
    %417 = vmatprep.subr.mxu0 0.0
    %418 = vmatpush2.msra.mxu0 0.0
    %419 = vmatprep.subr.mxu0 0.0
    %420 = vmatpush2.msra.mxu0 0.0
    %421 = vmatprep.subr.mxu0 0.0
    %422 = vmatpush2.msra.mxu0 0.0
    %423 = vmatprep.mubr.f32.mxu0 0.0
    %424 = vmatmul.mubr.f32.gmra.mxu0 %v332
    %v425 = vpop.f32.mrf.mxu0
    %v426 = vadd.f32 %v357, %v425
    %v427 = vpop.f32.mrf.mxu0
    %428 = vmatprep.mubr.f32.mxu0 0.0
    %429 = vmatmul.mubr.f32.gmra.mxu0 %v333
    %v430 = vpop.f32.mrf.mxu0
    %v431 = vadd.f32 %v357, %v430
    %v432 = vpop.f32.mrf.mxu0
    %433 = vdwg.mxu0
    %434 = vrot.lane.b32.xlu0 %v28, 64
    %v435 = vpop.permute.xlu0 %434
    %436 = vrot.lane.b32.xlu0 %v29, 64
    %v437 = vpop.permute.xlu0 %436
    %438 = vrot.lane.b32.xlu0 %v426, 64
    %v439 = vpop.permute.xlu0 %438
    %440 = vrot.lane.b32.xlu0 %v431, 64
    %v441 = vpop.permute.xlu0 %440
    %v442 = vlaneseq
    %v443 = vand.u32 %v442, 127
    %vm444 = vcmp.lt.s32.totalorder %v443, 8
    %v445 = vsel %vm444, %v439, 0.0
    %v446 = vsel %vm444, %v441, 0.0
    %v447 = vmul.f32 %v445, 0.5
    %v448 = vmul.f32 %v446, 0.5
    %v449 = vmul.f32 %v447, 1.442695
    %v450 = vpow.pop %v449
    %v451 = vmul.f32 %v448, 1.442695
    %v452 = vpow.pop %v451
    %v453 = vmul.f32 %v435, %v450
    %v454 = vmul.f32 %v437, %v452
    %v455 = vadd.f32 %v426, %v453
    %v456 = vadd.f32 %v431, %v454
    %s457 = scalar_lea.vmem [#allocation2], 512
    %v458 = vld [vmem:[%s457] sm:$0xff]
    %v459 = vld [vmem:[%s457 + $0x8] sm:$0xff]
    %v460 = vld [vmem:[%s457 + $0x10] sm:$0xff]
    %v461 = vld [vmem:[%s457 + $0x18] sm:$0xff]
    %v462 = vld [vmem:[%s457 + $0x20] sm:$0xff]
    %v463 = vld [vmem:[%s457 + $0x28] sm:$0xff]
    %v464 = vld [vmem:[%s457 + $0x30] sm:$0xff]
    %v465 = vld [vmem:[%s457 + $0x38] sm:$0xff]
    %v466 = vld [vmem:[%s457 + $0x40] sm:$0xff]
    %v467 = vld [vmem:[%s457 + $0x48] sm:$0xff]
    %v468 = vld [vmem:[%s457 + $0x50] sm:$0xff]
    %v469 = vld [vmem:[%s457 + $0x58] sm:$0xff]
    %v470 = vld [vmem:[%s457 + $0x60] sm:$0xff]
    %v471 = vld [vmem:[%s457 + $0x68] sm:$0xff]
    %v472 = vld [vmem:[%s457 + $0x70] sm:$0xff]
    %v473 = vld [vmem:[%s457 + $0x78] sm:$0xff]
    %s474 = scalar_lea.vmem %s2, 4
    %v475 = vld [vmem:[%s474] sm:$0x1]
    %v477 = vlaneseq
    %v478 = vshrl.u32 %v477, 7
    %v479 = vsub.s32 0, %v478
    %v480 = vrot.slane %v475, %v479
    %482 = vmatprep.subr.mxu0 0.0
    %483 = vmatpush1.msra.mxu0 %v473
    %484 = vmatprep.subr.mxu0 0.0
    %485 = vmatpush1.msra.mxu0 %v472
    %486 = vmatprep.subr.mxu0 0.0
    %487 = vmatpush1.msra.mxu0 %v471
    %488 = vmatprep.subr.mxu0 0.0
    %489 = vmatpush1.msra.mxu0 %v470
    %490 = vmatprep.subr.mxu0 0.0
    %491 = vmatpush1.msra.mxu0 %v469
    %492 = vmatprep.subr.mxu0 0.0
    %493 = vmatpush1.msra.mxu0 %v468
    %494 = vmatprep.subr.mxu0 0.0
    %495 = vmatpush1.msra.mxu0 %v467
    %496 = vmatprep.subr.mxu0 0.0
    %497 = vmatpush1.msra.mxu0 %v466
    %498 = vmatprep.subr.mxu0 0.0
    %499 = vmatpush1.msra.mxu0 %v465
    %500 = vmatprep.subr.mxu0 0.0
    %501 = vmatpush1.msra.mxu0 %v464
    %502 = vmatprep.subr.mxu0 0.0
    %503 = vmatpush1.msra.mxu0 %v463
    %504 = vmatprep.subr.mxu0 0.0
    %505 = vmatpush1.msra.mxu0 %v462
    %506 = vmatprep.subr.mxu0 0.0
    %507 = vmatpush1.msra.mxu0 %v461
    %508 = vmatprep.subr.mxu0 0.0
    %509 = vmatpush1.msra.mxu0 %v460
    %510 = vmatprep.subr.mxu0 0.0
    %511 = vmatpush1.msra.mxu0 %v459
    %512 = vmatprep.subr.mxu0 0.0
    %513 = vmatpush1.msra.mxu0 %v458
    %514 = vmatprep.subr.mxu0 0.0
    %515 = vmatpush2.msra.mxu0 0.0
    %516 = vmatprep.subr.mxu0 0.0
    %517 = vmatpush2.msra.mxu0 0.0
    %518 = vmatprep.subr.mxu0 0.0
    %519 = vmatpush2.msra.mxu0 0.0
    %520 = vmatprep.subr.mxu0 0.0
    %521 = vmatpush2.msra.mxu0 0.0
    %522 = vmatprep.subr.mxu0 0.0
    %523 = vmatpush2.msra.mxu0 0.0
    %524 = vmatprep.subr.mxu0 0.0
    %525 = vmatpush2.msra.mxu0 0.0
    %526 = vmatprep.subr.mxu0 0.0
    %527 = vmatpush2.msra.mxu0 0.0
    %528 = vmatprep.subr.mxu0 0.0
    %529 = vmatpush2.msra.mxu0 0.0
    %530 = vmatprep.subr.mxu0 0.0
    %531 = vmatpush2.msra.mxu0 0.0
    %532 = vmatprep.subr.mxu0 0.0
    %533 = vmatpush2.msra.mxu0 0.0
    %534 = vmatprep.subr.mxu0 0.0
    %535 = vmatpush2.msra.mxu0 0.0
    %536 = vmatprep.subr.mxu0 0.0
    %537 = vmatpush2.msra.mxu0 0.0
    %538 = vmatprep.subr.mxu0 0.0
    %539 = vmatpush2.msra.mxu0 0.0
    %540 = vmatprep.subr.mxu0 0.0
    %541 = vmatpush2.msra.mxu0 0.0
    %542 = vmatprep.subr.mxu0 0.0
    %543 = vmatpush2.msra.mxu0 0.0
    %544 = vmatprep.subr.mxu0 0.0
    %545 = vmatpush2.msra.mxu0 0.0
    %546 = vmatprep.mubr.f32.mxu0 0.0
    %547 = vmatmul.mubr.f32.gmra.mxu0 %v455
    %v548 = vpop.f32.mrf.mxu0
    %v549 = vadd.f32 %v480, %v548
    %v550 = vpop.f32.mrf.mxu0
    %551 = vmatprep.mubr.f32.mxu0 0.0
    %552 = vmatmul.mubr.f32.gmra.mxu0 %v456
    %v553 = vpop.f32.mrf.mxu0
    %v554 = vadd.f32 %v480, %v553
    %v555 = vpop.f32.mrf.mxu0
    %556 = vdwg.mxu0
    %v557 = vmax.f32 %v549, 0.0
    %v558 = vmax.f32 %v554, 0.0
    %s559 = scalar_lea.vmem [#allocation2], 640
    %v560 = vld [vmem:[%s559] sm:$0xff]
    %v561 = vld [vmem:[%s559 + $0x8] sm:$0xff]
    %v562 = vld [vmem:[%s559 + $0x10] sm:$0xff]
    %v563 = vld [vmem:[%s559 + $0x18] sm:$0xff]
    %v564 = vld [vmem:[%s559 + $0x20] sm:$0xff]
    %v565 = vld [vmem:[%s559 + $0x28] sm:$0xff]
    %v566 = vld [vmem:[%s559 + $0x30] sm:$0xff]
    %v567 = vld [vmem:[%s559 + $0x38] sm:$0xff]
    %v568 = vld [vmem:[%s559 + $0x40] sm:$0xff]
    %v569 = vld [vmem:[%s559 + $0x48] sm:$0xff]
    %v570 = vld [vmem:[%s559 + $0x50] sm:$0xff]
    %v571 = vld [vmem:[%s559 + $0x58] sm:$0xff]
    %v572 = vld [vmem:[%s559 + $0x60] sm:$0xff]
    %v573 = vld [vmem:[%s559 + $0x68] sm:$0xff]
    %v574 = vld [vmem:[%s559 + $0x70] sm:$0xff]
    %v575 = vld [vmem:[%s559 + $0x78] sm:$0xff]
    %s576 = scalar_lea.vmem %s2, 5
    %v577 = vld [vmem:[%s576] sm:$0x1]
    %v579 = vlaneseq
    %v580 = vshrl.u32 %v579, 7
    %v581 = vsub.s32 0, %v580
    %v582 = vrot.slane %v577, %v581
    %584 = vmatprep.subr.mxu0 0.0
    %585 = vmatpush1.msra.mxu0 %v575
    %586 = vmatprep.subr.mxu0 0.0
    %587 = vmatpush1.msra.mxu0 %v574
    %588 = vmatprep.subr.mxu0 0.0
    %589 = vmatpush1.msra.mxu0 %v573
    %590 = vmatprep.subr.mxu0 0.0
    %591 = vmatpush1.msra.mxu0 %v572
    %592 = vmatprep.subr.mxu0 0.0
    %593 = vmatpush1.msra.mxu0 %v571
    %594 = vmatprep.subr.mxu0 0.0
    %595 = vmatpush1.msra.mxu0 %v570
    %596 = vmatprep.subr.mxu0 0.0
    %597 = vmatpush1.msra.mxu0 %v569
    %598 = vmatprep.subr.mxu0 0.0
    %599 = vmatpush1.msra.mxu0 %v568
    %600 = vmatprep.subr.mxu0 0.0
    %601 = vmatpush1.msra.mxu0 %v567
    %602 = vmatprep.subr.mxu0 0.0
    %603 = vmatpush1.msra.mxu0 %v566
    %604 = vmatprep.subr.mxu0 0.0
    %605 = vmatpush1.msra.mxu0 %v565
    %606 = vmatprep.subr.mxu0 0.0
    %607 = vmatpush1.msra.mxu0 %v564
    %608 = vmatprep.subr.mxu0 0.0
    %609 = vmatpush1.msra.mxu0 %v563
    %610 = vmatprep.subr.mxu0 0.0
    %611 = vmatpush1.msra.mxu0 %v562
    %612 = vmatprep.subr.mxu0 0.0
    %613 = vmatpush1.msra.mxu0 %v561
    %614 = vmatprep.subr.mxu0 0.0
    %615 = vmatpush1.msra.mxu0 %v560
    %616 = vmatprep.subr.mxu0 0.0
    %617 = vmatpush2.msra.mxu0 0.0
    %618 = vmatprep.subr.mxu0 0.0
    %619 = vmatpush2.msra.mxu0 0.0
    %620 = vmatprep.subr.mxu0 0.0
    %621 = vmatpush2.msra.mxu0 0.0
    %622 = vmatprep.subr.mxu0 0.0
    %623 = vmatpush2.msra.mxu0 0.0
    %624 = vmatprep.subr.mxu0 0.0
    %625 = vmatpush2.msra.mxu0 0.0
    %626 = vmatprep.subr.mxu0 0.0
    %627 = vmatpush2.msra.mxu0 0.0
    %628 = vmatprep.subr.mxu0 0.0
    %629 = vmatpush2.msra.mxu0 0.0
    %630 = vmatprep.subr.mxu0 0.0
    %631 = vmatpush2.msra.mxu0 0.0
    %632 = vmatprep.subr.mxu0 0.0
    %633 = vmatpush2.msra.mxu0 0.0
    %634 = vmatprep.subr.mxu0 0.0
    %635 = vmatpush2.msra.mxu0 0.0
    %636 = vmatprep.subr.mxu0 0.0
    %637 = vmatpush2.msra.mxu0 0.0
    %638 = vmatprep.subr.mxu0 0.0
    %639 = vmatpush2.msra.mxu0 0.0
    %640 = vmatprep.subr.mxu0 0.0
    %641 = vmatpush2.msra.mxu0 0.0
    %642 = vmatprep.subr.mxu0 0.0
    %643 = vmatpush2.msra.mxu0 0.0
    %644 = vmatprep.subr.mxu0 0.0
    %645 = vmatpush2.msra.mxu0 0.0
    %646 = vmatprep.subr.mxu0 0.0
    %647 = vmatpush2.msra.mxu0 0.0
    %648 = vmatprep.mubr.f32.mxu0 0.0
    %649 = vmatmul.mubr.f32.gmra.mxu0 %v557
    %v650 = vpop.f32.mrf.mxu0
    %v651 = vadd.f32 %v582, %v650
    %v652 = vpop.f32.mrf.mxu0
    %653 = vmatprep.mubr.f32.mxu0 0.0
    %654 = vmatmul.mubr.f32.gmra.mxu0 %v558
    %v655 = vpop.f32.mrf.mxu0
    %v656 = vadd.f32 %v582, %v655
    %v657 = vpop.f32.mrf.mxu0
    %658 = vdwg.mxu0
    %v659 = vmax.f32 %v651, 0.0
    %v660 = vmax.f32 %v656, 0.0
    %s661 = scalar_lea.vmem [#allocation2], 768
    %v662 = vld [vmem:[%s661] sm:$0xff]
    %v663 = vld [vmem:[%s661 + $0x8] sm:$0xff]
    %v664 = vld [vmem:[%s661 + $0x10] sm:$0xff]
    %v665 = vld [vmem:[%s661 + $0x18] sm:$0xff]
    %v666 = vld [vmem:[%s661 + $0x20] sm:$0xff]
    %v667 = vld [vmem:[%s661 + $0x28] sm:$0xff]
    %v668 = vld [vmem:[%s661 + $0x30] sm:$0xff]
    %v669 = vld [vmem:[%s661 + $0x38] sm:$0xff]
    %v670 = vld [vmem:[%s661 + $0x40] sm:$0xff]
    %v671 = vld [vmem:[%s661 + $0x48] sm:$0xff]
    %v672 = vld [vmem:[%s661 + $0x50] sm:$0xff]
    %v673 = vld [vmem:[%s661 + $0x58] sm:$0xff]
    %v674 = vld [vmem:[%s661 + $0x60] sm:$0xff]
    %v675 = vld [vmem:[%s661 + $0x68] sm:$0xff]
    %v676 = vld [vmem:[%s661 + $0x70] sm:$0xff]
    %v677 = vld [vmem:[%s661 + $0x78] sm:$0xff]
    %s678 = scalar_lea.vmem %s2, 6
    %v679 = vld [vmem:[%s678] sm:$0x1]
    %v681 = vlaneseq
    %v682 = vshrl.u32 %v681, 7
    %v683 = vsub.s32 0, %v682
    %v684 = vrot.slane %v679, %v683
    %686 = vmatprep.subr.mxu0 0.0
    %687 = vmatpush1.msra.mxu0 %v677
    %688 = vmatprep.subr.mxu0 0.0
    %689 = vmatpush1.msra.mxu0 %v676
    %690 = vmatprep.subr.mxu0 0.0
    %691 = vmatpush1.msra.mxu0 %v675
    %692 = vmatprep.subr.mxu0 0.0
    %693 = vmatpush1.msra.mxu0 %v674
    %694 = vmatprep.subr.mxu0 0.0
    %695 = vmatpush1.msra.mxu0 %v673
    %696 = vmatprep.subr.mxu0 0.0
    %697 = vmatpush1.msra.mxu0 %v672
    %698 = vmatprep.subr.mxu0 0.0
    %699 = vmatpush1.msra.mxu0 %v671
    %700 = vmatprep.subr.mxu0 0.0
    %701 = vmatpush1.msra.mxu0 %v670
    %702 = vmatprep.subr.mxu0 0.0
    %703 = vmatpush1.msra.mxu0 %v669
    %704 = vmatprep.subr.mxu0 0.0
    %705 = vmatpush1.msra.mxu0 %v668
    %706 = vmatprep.subr.mxu0 0.0
    %707 = vmatpush1.msra.mxu0 %v667
    %708 = vmatprep.subr.mxu0 0.0
    %709 = vmatpush1.msra.mxu0 %v666
    %710 = vmatprep.subr.mxu0 0.0
    %711 = vmatpush1.msra.mxu0 %v665
    %712 = vmatprep.subr.mxu0 0.0
    %713 = vmatpush1.msra.mxu0 %v664
    %714 = vmatprep.subr.mxu0 0.0
    %715 = vmatpush1.msra.mxu0 %v663
    %716 = vmatprep.subr.mxu0 0.0
    %717 = vmatpush1.msra.mxu0 %v662
    %718 = vmatprep.subr.mxu0 0.0
    %719 = vmatpush2.msra.mxu0 0.0
    %720 = vmatprep.subr.mxu0 0.0
    %721 = vmatpush2.msra.mxu0 0.0
    %722 = vmatprep.subr.mxu0 0.0
    %723 = vmatpush2.msra.mxu0 0.0
    %724 = vmatprep.subr.mxu0 0.0
    %725 = vmatpush2.msra.mxu0 0.0
    %726 = vmatprep.subr.mxu0 0.0
    %727 = vmatpush2.msra.mxu0 0.0
    %728 = vmatprep.subr.mxu0 0.0
    %729 = vmatpush2.msra.mxu0 0.0
    %730 = vmatprep.subr.mxu0 0.0
    %731 = vmatpush2.msra.mxu0 0.0
    %732 = vmatprep.subr.mxu0 0.0
    %733 = vmatpush2.msra.mxu0 0.0
    %734 = vmatprep.subr.mxu0 0.0
    %735 = vmatpush2.msra.mxu0 0.0
    %736 = vmatprep.subr.mxu0 0.0
    %737 = vmatpush2.msra.mxu0 0.0
    %738 = vmatprep.subr.mxu0 0.0
    %739 = vmatpush2.msra.mxu0 0.0
    %740 = vmatprep.subr.mxu0 0.0
    %741 = vmatpush2.msra.mxu0 0.0
    %742 = vmatprep.subr.mxu0 0.0
    %743 = vmatpush2.msra.mxu0 0.0
    %744 = vmatprep.subr.mxu0 0.0
    %745 = vmatpush2.msra.mxu0 0.0
    %746 = vmatprep.subr.mxu0 0.0
    %747 = vmatpush2.msra.mxu0 0.0
    %748 = vmatprep.subr.mxu0 0.0
    %749 = vmatpush2.msra.mxu0 0.0
    %750 = vmatprep.mubr.f32.mxu0 0.0
    %751 = vmatmul.mubr.f32.gmra.mxu0 %v659
    %v752 = vpop.f32.mrf.mxu0
    %v753 = vadd.f32 %v684, %v752
    %v754 = vpop.f32.mrf.mxu0
    %755 = vmatprep.mubr.f32.mxu0 0.0
    %756 = vmatmul.mubr.f32.gmra.mxu0 %v660
    %v757 = vpop.f32.mrf.mxu0
    %v758 = vadd.f32 %v684, %v757
    %v759 = vpop.f32.mrf.mxu0
    %760 = vdwg.mxu0
    %v761 = vmax.f32 %v753, 0.0
    %v762 = vmax.f32 %v758, 0.0
    %s763 = scalar_lea.vmem [#allocation2], 896
    %v764 = vld [vmem:[%s763] sm:$0xff]
    %v765 = vld [vmem:[%s763 + $0x8] sm:$0xff]
    %v766 = vld [vmem:[%s763 + $0x10] sm:$0xff]
    %v767 = vld [vmem:[%s763 + $0x18] sm:$0xff]
    %v768 = vld [vmem:[%s763 + $0x20] sm:$0xff]
    %v769 = vld [vmem:[%s763 + $0x28] sm:$0xff]
    %v770 = vld [vmem:[%s763 + $0x30] sm:$0xff]
    %v771 = vld [vmem:[%s763 + $0x38] sm:$0xff]
    %v772 = vld [vmem:[%s763 + $0x40] sm:$0xff]
    %v773 = vld [vmem:[%s763 + $0x48] sm:$0xff]
    %v774 = vld [vmem:[%s763 + $0x50] sm:$0xff]
    %v775 = vld [vmem:[%s763 + $0x58] sm:$0xff]
    %v776 = vld [vmem:[%s763 + $0x60] sm:$0xff]
    %v777 = vld [vmem:[%s763 + $0x68] sm:$0xff]
    %v778 = vld [vmem:[%s763 + $0x70] sm:$0xff]
    %v779 = vld [vmem:[%s763 + $0x78] sm:$0xff]
    %s780 = scalar_lea.vmem %s2, 7
    %v781 = vld [vmem:[%s780] sm:$0x1]
    %v783 = vlaneseq
    %v784 = vshrl.u32 %v783, 7
    %v785 = vsub.s32 0, %v784
    %v786 = vrot.slane %v781, %v785
    %788 = vmatprep.subr.mxu0 0.0
    %789 = vmatpush1.msra.mxu0 %v779
    %790 = vmatprep.subr.mxu0 0.0
    %791 = vmatpush1.msra.mxu0 %v778
    %792 = vmatprep.subr.mxu0 0.0
    %793 = vmatpush1.msra.mxu0 %v777
    %794 = vmatprep.subr.mxu0 0.0
    %795 = vmatpush1.msra.mxu0 %v776
    %796 = vmatprep.subr.mxu0 0.0
    %797 = vmatpush1.msra.mxu0 %v775
    %798 = vmatprep.subr.mxu0 0.0
    %799 = vmatpush1.msra.mxu0 %v774
    %800 = vmatprep.subr.mxu0 0.0
    %801 = vmatpush1.msra.mxu0 %v773
    %802 = vmatprep.subr.mxu0 0.0
    %803 = vmatpush1.msra.mxu0 %v772
    %804 = vmatprep.subr.mxu0 0.0
    %805 = vmatpush1.msra.mxu0 %v771
    %806 = vmatprep.subr.mxu0 0.0
    %807 = vmatpush1.msra.mxu0 %v770
    %808 = vmatprep.subr.mxu0 0.0
    %809 = vmatpush1.msra.mxu0 %v769
    %810 = vmatprep.subr.mxu0 0.0
    %811 = vmatpush1.msra.mxu0 %v768
    %812 = vmatprep.subr.mxu0 0.0
    %813 = vmatpush1.msra.mxu0 %v767
    %814 = vmatprep.subr.mxu0 0.0
    %815 = vmatpush1.msra.mxu0 %v766
    %816 = vmatprep.subr.mxu0 0.0
    %817 = vmatpush1.msra.mxu0 %v765
    %818 = vmatprep.subr.mxu0 0.0
    %819 = vmatpush1.msra.mxu0 %v764
    %820 = vmatprep.subr.mxu0 0.0
    %821 = vmatpush2.msra.mxu0 0.0
    %822 = vmatprep.subr.mxu0 0.0
    %823 = vmatpush2.msra.mxu0 0.0
    %824 = vmatprep.subr.mxu0 0.0
    %825 = vmatpush2.msra.mxu0 0.0
    %826 = vmatprep.subr.mxu0 0.0
    %827 = vmatpush2.msra.mxu0 0.0
    %828 = vmatprep.subr.mxu0 0.0
    %829 = vmatpush2.msra.mxu0 0.0
    %830 = vmatprep.subr.mxu0 0.0
    %831 = vmatpush2.msra.mxu0 0.0
    %832 = vmatprep.subr.mxu0 0.0
    %833 = vmatpush2.msra.mxu0 0.0
    %834 = vmatprep.subr.mxu0 0.0
    %835 = vmatpush2.msra.mxu0 0.0
    %836 = vmatprep.subr.mxu0 0.0
    %837 = vmatpush2.msra.mxu0 0.0
    %838 = vmatprep.subr.mxu0 0.0
    %839 = vmatpush2.msra.mxu0 0.0
    %840 = vmatprep.subr.mxu0 0.0
    %841 = vmatpush2.msra.mxu0 0.0
    %842 = vmatprep.subr.mxu0 0.0
    %843 = vmatpush2.msra.mxu0 0.0
    %844 = vmatprep.subr.mxu0 0.0
    %845 = vmatpush2.msra.mxu0 0.0
    %846 = vmatprep.subr.mxu0 0.0
    %847 = vmatpush2.msra.mxu0 0.0
    %848 = vmatprep.subr.mxu0 0.0
    %849 = vmatpush2.msra.mxu0 0.0
    %850 = vmatprep.subr.mxu0 0.0
    %851 = vmatpush2.msra.mxu0 0.0
    %852 = vmatprep.mubr.f32.mxu0 0.0
    %853 = vmatmul.mubr.f32.gmra.mxu0 %v761
    %v854 = vpop.f32.mrf.mxu0
    %v855 = vadd.f32 %v786, %v854
    %v856 = vpop.f32.mrf.mxu0
    %857 = vmatprep.mubr.f32.mxu0 0.0
    %858 = vmatmul.mubr.f32.gmra.mxu0 %v762
    %v859 = vpop.f32.mrf.mxu0
    %v860 = vadd.f32 %v786, %v859
    %v861 = vpop.f32.mrf.mxu0
    %862 = vdwg.mxu0
    %v863 = vadd.f32 %v426, %v855
    %v864 = vadd.f32 %v431, %v860
    %865 = vst [vmem:[%s3] sm:$0xff] %v863
    %866 = vst [vmem:[%s3 + $0x8] sm:$0xff] %v864
    // Predicated region
    $region18: #{vae_forward.1} parent=1 // pred_check
      _
    $region19: #{vae_forward.1} parent=1 // pred_check_branch
      %868 = sbr.rel (0) target = $region21
    $region20: #{vae_forward.1} parent=1 // pred_region
      _
    $region21: #{vae_forward.1} parent=1 // pred_fallthru
      _
    // Predicated region
    $region22: #{vae_forward.1} parent=1 // pred_check
      _
    $region23: #{vae_forward.1} parent=1 // pred_check_branch
      %870 = sbr.rel (0) target = $region25
    $region24: #{vae_forward.1} parent=1 // pred_region
      _
    $region25: #{vae_forward.1} parent=1 // pred_fallthru
      _
    %871 = vsyncpa [#allocation3], 1

</llo_original>
